<compile_context>
chip_gen: v5e
topology: v5e:2x2
jax: 0.10.0
libtpu: 0.0.40
codegen_flags: <defaults>
</compile_context>

<pallas_src>
import functools

import jax
import jax.numpy as jnp
from jax.experimental import pallas as pl
from jax.experimental.pallas import tpu as pltpu


# ---------------------------------------------------------------------------
# Pass 1: hidden = text @ weight  (computed once, stored in compute_dtype)
# ---------------------------------------------------------------------------
def _project_kernel(x_ref, w_ref, h_ref, *, compute_dtype):
    """One (batch, s-block) grid step.

    x_ref : (1, BS, F)  rows of `text` in their original dtype
    w_ref : (F, F)      weight, already pre-cast to compute_dtype in the wrapper
                        (constant index_map -> fetched once, stays resident)
    h_ref : (1, BS, F)  hidden rows, stored in compute_dtype
    """
    x = x_ref[0].astype(compute_dtype)
    h = jax.lax.dot_general(
        x, w_ref[...], (((1,), (0,)), ((), ())),
        preferred_element_type=jnp.float32)
    h_ref[0] = h.astype(h_ref.dtype)


def _project_hidden(text, weight_c, *, block_s, compute_dtype):
    B, S, F = text.shape
    bs = min(block_s, S)
    grid = (B, pl.cdiv(S, bs))

    kernel = functools.partial(_project_kernel, compute_dtype=compute_dtype)
    return pl.pallas_call(
        kernel,
        out_shape=jax.ShapeDtypeStruct((B, S, F), compute_dtype),
        grid_spec=pltpu.PrefetchScalarGridSpec(
            num_scalar_prefetch=0,
            grid=grid,
            in_specs=[
                pl.BlockSpec((1, bs, F), lambda b, s: (b, s, 0)),
                # Weight: constant index_map -> DMA'd once, reused every step.
                pl.BlockSpec((F, F), lambda b, s: (0, 0)),
            ],
            out_specs=pl.BlockSpec((1, bs, F), lambda b, s: (b, s, 0)),
        ),
        compiler_params=pltpu.CompilerParams(
            dimension_semantics=("parallel", "parallel"),
        ),
    )(text, weight_c)


# ---------------------------------------------------------------------------
# Pass 2: scores = hidden_q @ hidden_k^T  (+ optional fused bias)
# ---------------------------------------------------------------------------
def _pair_scores_kernel(hq_ref, hk_ref, out_ref):
    """hq_ref: (1, BQ, F); hk_ref: (1, BK, F); out_ref: (1, BQ, BK)."""
    # A @ B^T as a last-dim contraction -> MXU handles it natively (no XLU
    # transpose, no extra VMEM re-layout), f32 accumulation.
    scores = jax.lax.dot_general(
        hq_ref[0], hk_ref[0], (((1,), (1,)), ((), ())),
        preferred_element_type=jnp.float32)
    out_ref[0] = scores.astype(out_ref.dtype)


def _pair_scores_bias_kernel(hq_ref, hk_ref, bias_ref, out_ref):
    """Same as above with the (1, BK) bias tile fused into the epilogue."""
    scores = jax.lax.dot_general(
        hq_ref[0], hk_ref[0], (((1,), (1,)), ((), ())),
        preferred_element_type=jnp.float32)
    out_ref[0] = (scores + bias_ref[...].astype(jnp.float32)).astype(out_ref.dtype)


def pair_generation(text, weight, bias=None, *, block_q=256, block_k=256,
                    block_s=256, compute_dtype=jnp.bfloat16,
                    out_dtype=jnp.float32):
    """text: (B, S, F); weight: (F, F); returns (B, S, S) pair scores.

    compute_dtype: dtype of the precomputed `hidden` (bf16 halves the streamed
      HBM bytes of pass 2; use f32 for bit-faithful results). Note: with bf16,
      hidden is accumulated in f32 then rounded to bf16 before the second
      matmul (documented double rounding).
    out_dtype: dtype of the (B, S, S) scores. The pair matmul is writeback-
      bound for small F, so bf16 output is ~2x end-to-end when tolerated.
    """
    B, S, F = text.shape
    assert weight.shape == (F, F)

    # Hoisted, one-time weight cast (was a per-grid-step VPU cast before).
    weight_c = weight.astype(compute_dtype)

    # ---- pass 1: hidden computed exactly once ----
    hidden = _project_hidden(text, weight_c, block_s=block_s,
                             compute_dtype=compute_dtype)

    # ---- pass 2: tiled pair scores ----
    # 256-edge tiles feed the 2x256^2 MXU on v6e/v7x; pass 128 on v5e, or
    # sweep up to 512 on v6e/v7x when S permits (output last dim stays a
    # multiple of 128 whenever S is).
    bq = min(block_q, S)
    bk = min(block_k, S)
    grid = (B, pl.cdiv(S, bq), pl.cdiv(S, bk))

    # Explicit, right-sized VMEM budget (double-buffered working set + 2x
    # headroom), clamped well below v7x's 64 MiB physical VMEM per TC.
    h_isz = jnp.dtype(compute_dtype).itemsize
    o_isz = jnp.dtype(out_dtype).itemsize
    working_set = 2 * (bq * F + bk * F + bk) * h_isz + 2 * bq * bk * o_isz
    vmem_budget = int(min(max(2 * working_set, 16 * 1024 * 1024),
                          48 * 1024 * 1024))

    in_specs = [
        # q-side hidden rows: block index constant along k -> no re-DMA.
        pl.BlockSpec((1, bq, F), lambda b, q, k: (b, q, 0)),
        # k-side hidden rows: streamed along the innermost grid axis.
        pl.BlockSpec((1, bk, F), lambda b, q, k: (b, k, 0)),
    ]
    inputs = [hidden, hidden]
    kernel = _pair_scores_kernel

    if bias is not None:
        # GraphConvolution-style `output + bias`; bias has shape (F,), so the
        # broadcast over the key axis of a (B, S, S) output is only shape-valid
        # when S == F (matching the original PyTorch code).
        assert bias.shape[-1] == S, (
            "bias has shape (F,) and broadcasts over the key axis of the "
            "(B, S, S) pair scores; this requires S == F "
            f"(got bias {bias.shape}, S={S})")
        bias2d = bias.reshape(1, S).astype(jnp.float32)
        in_specs.append(pl.BlockSpec((1, bk), lambda b, q, k: (0, k)))
        inputs.append(bias2d)
        kernel = _pair_scores_bias_kernel

    out = pl.pallas_call(
        kernel,
        out_shape=jax.ShapeDtypeStruct((B, S, S), out_dtype),
        grid_spec=pltpu.PrefetchScalarGridSpec(
            num_scalar_prefetch=0,
            grid=grid,
            in_specs=in_specs,
            out_specs=pl.BlockSpec((1, bq, bk), lambda b, q, k: (b, q, k)),
        ),
        compiler_params=pltpu.CompilerParams(
            # No carried scratch -> every axis is independent; megacore may
            # split any of them (v7x's 2 TCs) with no correctness constraint.
            dimension_semantics=("parallel", "parallel", "parallel"),
            vmem_limit_bytes=vmem_budget,
        ),
    )(*inputs)

    return out


if __name__ == "__main__":
    key = jax.random.PRNGKey(0)
    k1, k2, k3, k4, k5, k6, k7 = jax.random.split(key, 7)

    # ---- test 1: tiny shapes, f32 end-to-end (bit-faithful to reference) ----
    B, S, F = 2, 8, 32
    text = jax.random.normal(k1, (B, S, F), dtype=jnp.float32)
    # PyTorch leaves nn.Parameter(torch.FloatTensor(F, F)) uninitialized;
    # use a deterministic normal init instead.
    weight = jax.random.normal(k2, (F, F), dtype=jnp.float32) * 0.1

    out = pair_generation(text, weight, compute_dtype=jnp.float32)
    out = jax.block_until_ready(out)

    hidden_ref = jnp.matmul(text, weight)
    out_ref = jnp.matmul(hidden_ref, jnp.transpose(hidden_ref, (0, 2, 1)))
    assert out.shape == (B, S, S)
    assert jnp.allclose(out, out_ref, atol=1e-4, rtol=1e-4)

    # ---- test 2: exercises tiling and the bf16 hidden / MXU path ----
    B2, S2, F2 = 2, 256, 64
    text2 = jax.random.normal(k3, (B2, S2, F2), dtype=jnp.float32)
    weight2 = jax.random.normal(k4, (F2, F2), dtype=jnp.float32) * 0.1

    out2 = pair_generation(text2, weight2, block_q=128, block_k=128,
                           block_s=128, compute_dtype=jnp.bfloat16)
    out2 = jax.block_until_ready(out2)

    hidden_ref2 = jnp.matmul(text2, weight2)
    out_ref2 = jnp.matmul(hidden_ref2, jnp.transpose(hidden_ref2, (0, 2, 1)))
    assert out2.shape == (B2, S2, S2)
    # bf16 hidden / f32 accumulation -> relaxed tolerance vs the f32 reference.
    assert jnp.allclose(out2, out_ref2, atol=0.5, rtol=0.05)

    # ---- test 3: fused-bias epilogue (only shape-valid when S == F) ----
    B3, S3, F3 = 1, 64, 64
    text3 = jax.random.normal(k5, (B3, S3, F3), dtype=jnp.float32)
    weight3 = jax.random.normal(k6, (F3, F3), dtype=jnp.float32) * 0.1
    bias3 = jax.random.normal(k7, (F3,), dtype=jnp.float32) * 0.1

    out3 = pair_generation(text3, weight3, bias3, compute_dtype=jnp.float32)
    out3 = jax.block_until_ready(out3)

    hidden_ref3 = jnp.matmul(text3, weight3)
    out_ref3 = jnp.matmul(hidden_ref3, jnp.transpose(hidden_ref3, (0, 2, 1))) + bias3
    assert out3.shape == (B3, S3, S3)
    assert jnp.allclose(out3, out_ref3, atol=1e-4, rtol=1e-4)

    print("KERNEL_OK")
</pallas_src>

<mosaic_0001>
module attributes {stable_mosaic.version = 11 : i64} {
  func.func @_project_kernel(%arg0: i32, %arg1: i32, %arg2: memref<1x8x32xf32, #tpu.memory_space<vmem>>, %arg3: memref<32x32xf32, #tpu.memory_space<vmem>>, %arg4: memref<1x8x32xf32, #tpu.memory_space<vmem>>) attributes {dimension_semantics = [#tpu.dimension_semantics<parallel>, #tpu.dimension_semantics<parallel>], iteration_bounds = array<i64: 2, 1>, scalar_prefetch = 0 : i64, scratch_operands = 0 : i64, tpu.core_type = #tpu.core_type<tc>, window_params = [{transform_indices = @transform_0, window_bounds = array<i64: 1, 8, 32>}, {pipeline_mode = #tpu.pipeline_mode<synchronous>, transform_indices = @transform_1, window_bounds = array<i64: 32, 32>}, {transform_indices = @transform_2, window_bounds = array<i64: 1, 8, 32>}]} {
    %c0 = arith.constant 0 : index
    %c0_0 = arith.constant 0 : index
    %c0_1 = arith.constant 0 : index
    %0 = vector.load %arg2[%c0, %c0_0, %c0_1] : memref<1x8x32xf32, #tpu.memory_space<vmem>>, vector<1x8x32xf32>
    %1 = vector.shape_cast %0 : vector<1x8x32xf32> to vector<8x32xf32>
    %c0_2 = arith.constant 0 : index
    %c0_3 = arith.constant 0 : index
    %2 = vector.load %arg3[%c0_2, %c0_3] : memref<32x32xf32, #tpu.memory_space<vmem>>, vector<32x32xf32>
    %cst = arith.constant dense<0.000000e+00> : vector<8x32xf32>
    %3 = tpu.matmul %1, %2, %cst {dimension_numbers = #tpu.dot_dimension_numbers<[1], [0], [0], [1], [0, 0, 1, 1], [], []>} : vector<8x32xf32>, vector<32x32xf32>, vector<8x32xf32> -> vector<8x32xf32>
    %c0_4 = arith.constant 0 : index
    %c0_5 = arith.constant 0 : index
    %c0_6 = arith.constant 0 : index
    %4 = vector.load %arg4[%c0_4, %c0_5, %c0_6] : memref<1x8x32xf32, #tpu.memory_space<vmem>>, vector<1x8x32xf32>
    %5 = vector.shape_cast %4 : vector<1x8x32xf32> to vector<8x32xf32>
    %6 = vector.shape_cast %3 : vector<8x32xf32> to vector<1x8x32xf32>
    tpu.vector_store %arg4[%c0_4, %c0_5, %c0_6], %6 {strides = array<i32>} : memref<1x8x32xf32, #tpu.memory_space<vmem>>, vector<1x8x32xf32>,
    return
  }
  func.func @transform_0(%arg0: i32, %arg1: i32) -> (i32, i32, i32) {
    %c0_i32 = arith.constant 0 : i32
    %c0_i32_0 = arith.constant 0 : i32
    return %arg0, %arg1, %c0_i32 : i32, i32, i32
  }
  func.func @transform_1(%arg0: i32, %arg1: i32) -> (i32, i32) {
    %c0_i32 = arith.constant 0 : i32
    %c0_i32_0 = arith.constant 0 : i32
    %c0_i32_1 = arith.constant 0 : i32
    return %c0_i32, %c0_i32_0 : i32, i32
  }
  func.func @transform_2(%arg0: i32, %arg1: i32) -> (i32, i32, i32) {
    %c0_i32 = arith.constant 0 : i32
    %c0_i32_0 = arith.constant 0 : i32
    return %arg0, %arg1, %c0_i32 : i32, i32, i32
  }
}

</mosaic_0001>

<llo_original>
// kernel: tpu_custom_call.1
$region0: #{tpu_custom_call.1}
  #allocation0 [shape = 'u32[]', space=smem, size = 0x4, offset = 0x4, fixed_abs, tag = 'smem constant byte address 0x4 - core index']
  #allocation1 [shape = 'u32[72,128]{1,0:T(1,128)}', space=vmem, size = 0x9000, scoped, tag = 'internal scratch']
  %s0 = inlined_call_operand.hbm [shape: f32[2,8,32], index: 0, kind: input, shape index: {}]
  %s1 = inlined_call_operand.hbm [shape: f32[32,32], index: 1, kind: input, shape index: {}]
  %s2 = inlined_call_operand.hbm [shape: f32[2,8,32], index: 2, kind: output, shape index: {}]
  %s3 = sld [smem:[#allocation0]]
  $region49: #{tpu_custom_call.1} parent=0
    _
  %s5 = ssub.s32 1, %s3
  %s6 = scalar_select 0, %s5, %s3
  $region1: #{tpu_custom_call.1} parent=0
    #allocation2 [shape = 'u8[8192]{0}', space=vmem, size = 0x2000, scoped, tag = 'input window, operand 0']
    #allocation3 [shape = 's32[2]{0}', space=sflag, size = 0x8, scoped, tag = 'scoped memory for tpu_custom_call.1']
    #allocation4 [shape = 's32[2]{0}', space=sflag, size = 0x8, scoped, tag = 'scoped memory for tpu_custom_call.1']
    #allocation5 [shape = 'u8[16384]{0}', space=vmem, size = 0x4000, scoped, tag = 'input window, operand 1, single buffered']
    #allocation6 [shape = 's32[1]{0}', space=sflag, size = 0x4, scoped, tag = 'scoped memory for tpu_custom_call.1']
    #allocation7 [shape = 'u8[8192]{0}', space=vmem, size = 0x2000, scoped, tag = 'output window, operand 0']
    %7 = vsyncpa [#allocation3], 0
    %s8 = scalar_lea.sflag [#allocation3], 1
    %9 = vsyncpa %s8, 0
    %10 = vsyncpa [#allocation6], 0
    %11 = vsyncpa [#allocation4], 0
    %s12 = scalar_lea.sflag [#allocation4], 1
    %13 = vsyncpa %s12, 0
    loop: start=0, step=1, limit=4
    $region2: #{tpu_custom_call.1} parent=1 // loop_pre_header
      _
    $region3: #{tpu_custom_call.1} parent=1 // loop_header
      %s15 = sphi 0, %s19
      %p16 = scmp.ge.s32.totalorder %s15, 4
      %s22 = sphi 0, %s34
      %s23 = sphi 0, %s30
      %s24 = sphi 0, %s22
      %s25 = sphi 0, %s23
      %s26 = sphi 0, %s24
      %s27 = sphi 0, %s25
      %s39 = sphi 0, %s41
      %s42 = sphi 0, %s39
      %s43 = sphi 0, %s42
      %s59 = sphi 0, %s43
      %s63 = sphi 0, %s63
      %s65 = sphi 0, %s63
      %s66 = sphi 0, %s65
      %s80 = sphi 0, %s66
      %s88 = sphi 0, %s90
      %s91 = sphi 0, %s88
      %s92 = sphi 0, %s91
      %s108 = sphi 0, %s92
    $region4: #{tpu_custom_call.1} parent=1 // loop_header_branch
      %18 = sbr.rel (%p16) target = $region8
    $region5: #{tpu_custom_call.1} parent=1 // loop_body
      %s20 = ssub.s32 %s15, 1
      %s21 = ssub.s32 %s15, 2
      %s28 = sadd.s32 1, %s23
      %p29 = scmp.ge.s32.totalorder %s28, 1
      %s30 = scalar_select %p29, 0, %s28
      %s31 = sadd.s32 1, %s22
      %s32 = scalar_select %p29, %s31, %s22
      %p33 = scmp.ge.s32.totalorder %s32, 2
      %s34 = scalar_select %p33, 0, %s32
      %s35 = ssub.s32 %s22, %s34
      %s36 = ssub.s32 %s23, %s30
      %s37 = sor.u32 %s35, %s36
      %p38 = scmp.eq.s32.totalorder %s37, 0
      %s40 = sadd.s32 %s39, 1
      %s41 = scalar_select %p38, %s39, %s40
      %p44 = pneg %p38
      %p45 = scmp.eq.s32.totalorder %s15, 1
      %p46 = por %p44, %p45
      %p47 = scmp.ne.s32.totalorder %s39, %s42
      %p48 = scmp.eq.s32.totalorder %s15, 0
      %p49 = por %p47, %p48
      %p50 = scmp.ne.s32.totalorder %s39, %s42
      %p51 = scmp.eq.s32.totalorder %s20, 1
      %p52 = por %p50, %p51
      %p53 = scmp.ne.s32.totalorder %s42, %s43
      %p54 = scmp.eq.s32.totalorder %s20, 0
      %p55 = por %p53, %p54
      %p56 = scmp.ne.s32.totalorder %s42, %s43
      %p57 = scmp.eq.s32.totalorder %s21, 1
      %p58 = por %p56, %p57
      %p60 = scmp.ne.s32.totalorder %s43, %s59
      %p61 = scmp.eq.s32.totalorder %s21, 0
      %p62 = por %p60, %p61
      %s64 = sadd.s32 %s63, 1
      %p67 = scmp.eq.s32.totalorder %s15, 1
      %p68 = scmp.ne.s32.totalorder %s63, %s65
      %p69 = scmp.eq.s32.totalorder %s15, 0
      %p70 = por %p68, %p69
      %p71 = scmp.ne.s32.totalorder %s63, %s65
      %p72 = scmp.eq.s32.totalorder %s20, 1
      %p73 = por %p71, %p72
      %p74 = scmp.ne.s32.totalorder %s65, %s66
      %p75 = scmp.eq.s32.totalorder %s20, 0
      %p76 = por %p74, %p75
      %p77 = scmp.ne.s32.totalorder %s65, %s66
      %p78 = scmp.eq.s32.totalorder %s21, 1
      %p79 = por %p77, %p78
      %p81 = scmp.ne.s32.totalorder %s66, %s80
      %p82 = scmp.eq.s32.totalorder %s21, 0
      %p83 = por %p81, %p82
      %s84 = ssub.s32 %s22, %s34
      %s85 = ssub.s32 %s23, %s30
      %s86 = sor.u32 %s84, %s85
      %p87 = scmp.eq.s32.totalorder %s86, 0
      %s89 = sadd.s32 %s88, 1
      %s90 = scalar_select %p87, %s88, %s89
      %p93 = pneg %p87
      %p94 = scmp.eq.s32.totalorder %s15, 1
      %p95 = por %p93, %p94
      %p96 = scmp.ne.s32.totalorder %s88, %s91
      %p97 = scmp.eq.s32.totalorder %s15, 0
      %p98 = por %p96, %p97
      %p99 = scmp.ne.s32.totalorder %s88, %s91
      %p100 = scmp.eq.s32.totalorder %s20, 1
      %p101 = por %p99, %p100
      %p102 = scmp.ne.s32.totalorder %s91, %s92
      %p103 = scmp.eq.s32.totalorder %s20, 0
      %p104 = por %p102, %p103
      %p105 = scmp.ne.s32.totalorder %s91, %s92
      %p106 = scmp.eq.s32.totalorder %s21, 1
      %p107 = por %p105, %p106
      %p109 = scmp.ne.s32.totalorder %s92, %s108
      %p110 = scmp.eq.s32.totalorder %s21, 0
      %p111 = por %p109, %p110
      %p112 = scmp.le.s32.totalorder 1, %s15
      %p113 = scmp.lt.s32.totalorder %s15, 3
      %p114 = pnand %p112, %p113
      %p115 = pneg %p114
      // Predicated region
      $region9: #{tpu_custom_call.1} parent=5 // pred_check
        _
      $region10: #{tpu_custom_call.1} parent=5 // pred_check_branch
        %117 = sbr.rel (%p114) target = $region12
      $region11: #{tpu_custom_call.1} parent=5 // pred_region
        %s118 = ssub.s32 %s15, 1
        // Predicated region
        $region13: #{tpu_custom_call.1} parent=11 // pred_check
          %p119 = pneg %p76
        $region14: #{tpu_custom_call.1} parent=11 // pred_check_branch
          %121 = sbr.rel (%p119) target = $region16
        $region15: #{tpu_custom_call.1} parent=11 // pred_region
          %123 = vsyncadd [#allocation6], 0
          %s124 = sshll.u32 %s1, 4
          %s125 = int_to_ptr.hbm [resolvable:$true] %s124
          %s126 = sshll.u32 [#allocation5], 4
          %s127 = int_to_ptr.vmem [resolvable:$true] %s126
          %132 = dma.hbm_to_vmem [thread:$0]  %s125, 512, %s127, [#allocation6], 128, 128, 8
        $region16: #{tpu_custom_call.1} parent=11 // pred_fallthru
          _
      $region12: #{tpu_custom_call.1} parent=5 // pred_fallthru
        _
      %p133 = scmp.lt.s32.totalorder %s15, 2
      // Predicated region
      $region17: #{tpu_custom_call.1} parent=5 // pred_check
        %p134 = pneg %p133
      $region18: #{tpu_custom_call.1} parent=5 // pred_check_branch
        %136 = sbr.rel (%p134) target = $region20
      $region19: #{tpu_custom_call.1} parent=5 // pred_region
        // Predicated region
        $region21: #{tpu_custom_call.1} parent=19 // pred_check
          %p137 = pneg %p49
        $region22: #{tpu_custom_call.1} parent=19 // pred_check_branch
          %139 = sbr.rel (%p137) target = $region24
        $region23: #{tpu_custom_call.1} parent=19 // pred_region
          %s140 = sand.u32 %s39, 1
          %s141 = scalar_lea.sflag [#allocation3], %s140
          %s142 = sand.u32 %s39, 1
          %s143 = smul.addr %s142, 8
          %s144 = scalar_lea.vmem [#allocation2], %s143
          %146 = vsyncadd %s141, 0
          %s147 = sadd.s32 %s23, %s22
          %s148 = smul.addr %s147, 8
          %s149 = scalar_lea.hbm %s0, %s148
          %s151 = sshll.u32 %s149, 4
          %s152 = int_to_ptr.hbm [resolvable:$true] %s151
          %s153 = sshll.u32 %s144, 4
          %s154 = int_to_ptr.vmem [resolvable:$true] %s153
          %156 = dma.hbm_to_vmem [thread:$0]  %s152, 128, %s154, %s141
        $region24: #{tpu_custom_call.1} parent=19 // pred_fallthru
          _
      $region20: #{tpu_custom_call.1} parent=5 // pred_fallthru
        _
      %p157 = scmp.le.s32.totalorder 1, %s15
      %p158 = scmp.lt.s32.totalorder %s15, 3
      %p159 = pnand %p157, %p158
      %p160 = pneg %p159
      // Predicated region
      $region25: #{tpu_custom_call.1} parent=5 // pred_check
        _
      $region26: #{tpu_custom_call.1} parent=5 // pred_check_branch
        %162 = sbr.rel (%p159) target = $region28
      $region27: #{tpu_custom_call.1} parent=5 // pred_region
        %s163 = ssub.s32 %s15, 1
        %s164 = sand.u32 %s42, 1
        %s165 = scalar_lea.sflag [#allocation3], %s164
        %s166 = sand.u32 %s42, 1
        %s167 = smul.addr %s166, 8
        %s168 = scalar_lea.vmem [#allocation2], %s167
        // Predicated region
        $region29: #{tpu_custom_call.1} parent=27 // pred_check
          %p169 = pneg %p55
        $region30: #{tpu_custom_call.1} parent=27 // pred_check_branch
          %171 = sbr.rel (%p169) target = $region32
        $region31: #{tpu_custom_call.1} parent=27 // pred_region
          %173 = dma.done %s165, 128
        $region32: #{tpu_custom_call.1} parent=27 // pred_fallthru
          _
        // Predicated region
        $region33: #{tpu_custom_call.1} parent=27 // pred_check
          %p174 = pneg %p76
        $region34: #{tpu_custom_call.1} parent=27 // pred_check_branch
          %176 = sbr.rel (%p174) target = $region36
        $region35: #{tpu_custom_call.1} parent=27 // pred_region
          %178 = dma.done [#allocation6], 512
        $region36: #{tpu_custom_call.1} parent=27 // pred_fallthru
          _
        %s179 = sand.u32 %s42, 1
        %s180 = scalar_lea.sflag [#allocation3], %s179
        %s181 = sand.u32 %s42, 1
        %s182 = smul.addr %s181, 8
        %s183 = scalar_lea.vmem [#allocation2], %s182
        %p184 = pneg %p55
        %p185 = pneg %p52
        %p186 = pneg %p76
        %p187 = pneg %p73
        %p188 = pneg %p104
        %p189 = pneg %p101
        %s190 = sand.u32 %s91, 1
        %s191 = scalar_lea.sflag [#allocation4], %s190
        %s192 = sand.u32 %s91, 1
        %s193 = smul.addr %s192, 8
        %s194 = scalar_lea.vmem [#allocation7], %s193
        %v195 = vld [vmem:[%s168] sm:$0xff]
        %v196 = vld [vmem:[#allocation5] sm:$0xff]
        %v197 = vld [vmem:[#allocation5 + $0x8] sm:$0xff]
        %v198 = vld [vmem:[#allocation5 + $0x10] sm:$0xff]
        %v199 = vld [vmem:[#allocation5 + $0x18] sm:$0xff]
        %vm200 = vcmask 261120
        %v202 = vsel %vm200, %v195, 0
        %204 = vmatpush.msra.mxu0 0.0
        %205 = vmatpush.msra.mxu0 0.0
        %206 = vmatpush.msra.mxu0 0.0
        %207 = vmatpush.msra.mxu0 0.0
        %208 = vmatpush.msra.mxu0 0.0
        %209 = vmatpush.msra.mxu0 0.0
        %210 = vmatpush.msra.mxu0 0.0
        %211 = vmatpush.msra.mxu0 0.0
        %212 = vmatpush.msra.mxu0 0.0
        %213 = vmatpush.msra.mxu0 0.0
        %214 = vmatpush.msra.mxu0 0.0
        %215 = vmatpush.msra.mxu0 0.0
        %216 = vmatpush.msra.mxu0 %v199
        %217 = vmatpush.msra.mxu0 %v198
        %218 = vmatpush.msra.mxu0 %v197
        %219 = vmatpush.msra.mxu0 %v196
        %220 = vmatmul.f32.gmra.mxu0 %v202
        %v221 = vpop.f32.mrf.mxu0
        %v222 = vadd.f32 0.0, %v221
        %223 = vdwg.mxu0
        %224 = vst.msk [vmem:[%s194] sm:$0xff] %vm200, %v222
        %s225 = sand.u32 %s91, 1
        %s226 = scalar_lea.sflag [#allocation4], %s225
        %s227 = sand.u32 %s91, 1
        %s228 = smul.addr %s227, 8
        %s229 = scalar_lea.vmem [#allocation7], %s228
        // Predicated region
        $region37: #{tpu_custom_call.1} parent=27 // pred_check
          %p230 = pneg %p101
        $region38: #{tpu_custom_call.1} parent=27 // pred_check_branch
          %232 = sbr.rel (%p230) target = $region40
        $region39: #{tpu_custom_call.1} parent=27 // pred_region
          %234 = vsyncadd %s226, 0
          %s235 = sadd.s32 %s25, %s24
          %s236 = smul.addr %s235, 8
          %s237 = scalar_lea.hbm %s2, %s236
          %s239 = sshll.u32 %s229, 4
          %s240 = int_to_ptr.vmem [resolvable:$true] %s239
          %s241 = sshll.u32 %s237, 4
          %s242 = int_to_ptr.hbm [resolvable:$true] %s241
          %244 = dma.vmem_to_hbm [thread:$0]  %s240, 128, %s242, %s226
        $region40: #{tpu_custom_call.1} parent=27 // pred_fallthru
          _
      $region28: #{tpu_custom_call.1} parent=5 // pred_fallthru
        _
      %p245 = scmp.le.s32.totalorder 2, %s15
      // Predicated region
      $region41: #{tpu_custom_call.1} parent=5 // pred_check
        %p246 = pneg %p245
      $region42: #{tpu_custom_call.1} parent=5 // pred_check_branch
        %248 = sbr.rel (%p246) target = $region44
      $region43: #{tpu_custom_call.1} parent=5 // pred_region
        %s249 = ssub.s32 %s15, 2
        // Predicated region
        $region45: #{tpu_custom_call.1} parent=43 // pred_check
          %p250 = pneg %p107
        $region46: #{tpu_custom_call.1} parent=43 // pred_check_branch
          %252 = sbr.rel (%p250) target = $region48
        $region47: #{tpu_custom_call.1} parent=43 // pred_region
          %s253 = sand.u32 %s92, 1
          %s254 = scalar_lea.sflag [#allocation4], %s253
          %s255 = sand.u32 %s92, 1
          %s256 = smul.addr %s255, 8
          %s257 = scalar_lea.vmem [#allocation7], %s256
          %259 = dma.done %s254, 128
        $region48: #{tpu_custom_call.1} parent=43 // pred_fallthru
          _
      $region44: #{tpu_custom_call.1} parent=5 // pred_fallthru
        _
    $region6: #{tpu_custom_call.1} parent=1 // loop_footer
      %s19 = sadd.s32 1, %s15
    $region7: #{tpu_custom_call.1} parent=1 // loop_footer_branch
      %14 = sbr.rel target = $region3
    $region8: #{tpu_custom_call.1} parent=1 // loop_exit
      _
    %260 = vsyncpa [#allocation3], 1
    %s261 = scalar_lea.sflag [#allocation3], 1
    %262 = vsyncpa %s261, 1
    %263 = vsyncpa [#allocation6], 1
    %264 = vsyncpa [#allocation4], 1
    %s265 = scalar_lea.sflag [#allocation4], 1
    %266 = vsyncpa %s265, 1

</llo_original>
